<compile_context>
chip_gen: v7x
topology: tpu7x:2x2x1
jax: 0.10.0
libtpu: 0.0.40
codegen_flags: <defaults>
</compile_context>

<pallas_src>
import jax
import jax.numpy as jnp
from jax.experimental import pallas as pl
from jax.experimental.pallas import tpu as pltpu

NEGATIVE_SLOPE = 0.01
IN_FEATURES = 3
OUT_FEATURES = 8

PACK = 16                  # rows packed per lane-row: 16*8 = 128 output lanes (dense stores)
TB_MIN = 8192              # min rows per batch tile once we tile at all
TB_MAX = 65536             # max rows per batch tile (~8 MiB double-buffered VMEM)
SMALL_BATCH_BYPASS = 1024  # below this, plain fused XLA beats pallas dispatch overhead


def _round_up(n, m):
    return ((n + m - 1) // m) * m


def _linear_leaky_kernel(xp_ref, wp_ref, bp_ref, op_ref):
    # xp_ref: (TBP, 48)  wp_ref: (48, 128)  bp_ref: (1, 128)  op_ref: (TBP, 128)
    y = jnp.dot(xp_ref[...], wp_ref[...], preferred_element_type=jnp.float32)
    y = y + bp_ref[...]                                   # broadcast packed bias
    op_ref[...] = jnp.where(y > 0, y, y * NEGATIVE_SLOPE)  # leaky ReLU on the VPU


def _choose_tile_rows(B):
    """Rows per batch tile: multiple of 128, in [TB_MIN, TB_MAX], >= ~8 tiles when big."""
    b128 = _round_up(B, 128)
    if b128 <= TB_MIN:
        return b128
    tb = _round_up(pl.cdiv(b128, 8), 128)   # aim for >= 8 grid steps (v7x megacore)
    return max(TB_MIN, min(TB_MAX, tb))


def _pallas_forward(x, weight, bias):
    """x: (B, 3) f32; weight: (8, 3) torch convention; bias: (8,) -> (B, 8) f32."""
    B = x.shape[0]
    TB = _choose_tile_rows(B)
    Bp = _round_up(B, TB)
    TBP = TB // PACK
    KP = IN_FEATURES * PACK    # 48
    NP = OUT_FEATURES * PACK   # 128

    if Bp != B:
        x = jnp.pad(x, ((0, Bp - B), (0, 0)))
    # Contiguous (metadata-only) reshape: (Bp, 3) -> (Bp/16, 48). No HBM transpose pass.
    xp = x.reshape(Bp // PACK, KP)

    # Block-diagonal packed weight: Wp[3*i+k, 8*i+j] = W[j, k]; packed bias bp[8*i+j] = b[j].
    eye = jnp.eye(PACK, dtype=jnp.float32)
    wp = (eye[:, None, :, None] * weight.T[None, :, None, :]).reshape(KP, NP)
    bp = jnp.tile(bias, PACK).reshape(1, NP)

    grid = (Bp // TB,)
    cost = pl.CostEstimate(
        flops=2 * Bp * IN_FEATURES * OUT_FEATURES,
        transcendentals=0,
        bytes_accessed=Bp * 4 * (IN_FEATURES + OUT_FEATURES) + (KP * NP + NP) * 4,
    )

    outp = pl.pallas_call(
        _linear_leaky_kernel,
        out_shape=jax.ShapeDtypeStruct((Bp // PACK, NP), jnp.float32),
        grid=grid,
        in_specs=[
            pl.BlockSpec((TBP, KP), lambda i: (i, 0)),     # activations, pipelined per tile
            pl.BlockSpec((KP, NP), lambda i: (0, 0)),      # packed weight, VMEM-resident
            pl.BlockSpec((1, NP), lambda i: (0, 0)),       # packed bias, VMEM-resident
        ],
        out_specs=pl.BlockSpec((TBP, NP), lambda i: (i, 0)),  # 128-lane dense stores
        compiler_params=pltpu.CompilerParams(
            dimension_semantics=("parallel",),             # v7x: shard batch tiles over 2 TCs
            vmem_limit_bytes=32 * 1024 * 1024,
        ),
        cost_estimate=cost,
    )(xp, wp, bp)

    out = outp.reshape(Bp, OUT_FEATURES)                   # contiguous reshape back
    return out if Bp == B else out[:B]


def model_forward(x, weight, bias, *, force_pallas=False):
    """Forward of the PyTorch Model. weight: (8, 3) torch nn.Linear convention."""
    B = x.shape[0]
    if B < SMALL_BATCH_BYPASS and not force_pallas:
        # Tiny batches: padded-to-128 tiles + pallas dispatch is pure overhead.
        y = x @ weight.T + bias
        return jnp.where(y > 0, y, y * NEGATIVE_SLOPE)
    return _pallas_forward(x, weight, bias)


if __name__ == "__main__":
    key = jax.random.PRNGKey(0)
    kx, kw, kb, kx2 = jax.random.split(key, 4)

    # Deterministic params, mimicking nn.Linear init (uniform +-1/sqrt(fan_in)), torch layout.
    bound = 1.0 / (IN_FEATURES ** 0.5)
    weight = jax.random.uniform(kw, (OUT_FEATURES, IN_FEATURES), jnp.float32, -bound, bound)
    bias = jax.random.uniform(kb, (OUT_FEATURES,), jnp.float32, -bound, bound)

    def ref(x):
        y = x @ weight.T + bias
        return jnp.where(y > 0, y, y * NEGATIVE_SLOPE)

    # 1) module-sized input, forced through the Pallas kernel (single 128-row tile).
    x_small = jax.random.normal(kx, (2, IN_FEATURES), jnp.float32)
    out_small = jax.block_until_ready(model_forward(x_small, weight, bias, force_pallas=True))
    assert out_small.shape == (2, OUT_FEATURES)
    assert jnp.allclose(out_small, ref(x_small), atol=1e-3, rtol=1e-3)

    # 2) same input via the small-batch bypass (plain fused XLA path).
    out_bypass = jax.block_until_ready(model_forward(x_small, weight, bias))
    assert jnp.allclose(out_bypass, ref(x_small), atol=1e-5, rtol=1e-5)

    # 3) multi-tile, non-tile-aligned batch through the Pallas path (grid of 3 tiles).
    x_big = jax.random.normal(kx2, (20000, IN_FEATURES), jnp.float32)
    out_big = jax.block_until_ready(model_forward(x_big, weight, bias))
    assert out_big.shape == (20000, OUT_FEATURES)
    assert jnp.allclose(out_big, ref(x_big), atol=1e-3, rtol=1e-3)

    print("KERNEL_OK")
</pallas_src>

<mosaic_0001>
module attributes {stable_mosaic.version = 11 : i64} {
  func.func @_linear_leaky_kernel(%arg0: i32, %arg1: memref<8x48xf32, #tpu.memory_space<vmem>>, %arg2: memref<48x128xf32, #tpu.memory_space<vmem>>, %arg3: memref<1x128xf32, #tpu.memory_space<vmem>>, %arg4: memref<8x128xf32, #tpu.memory_space<vmem>>) attributes {dimension_semantics = [#tpu.dimension_semantics<parallel>], iteration_bounds = array<i64: 1>, scalar_prefetch = 0 : i64, scratch_operands = 0 : i64, tpu.core_type = #tpu.core_type<tc>, window_params = [{transform_indices = @transform_0, window_bounds = array<i64: 8, 48>}, {pipeline_mode = #tpu.pipeline_mode<synchronous>, transform_indices = @transform_1, window_bounds = array<i64: 48, 128>}, {pipeline_mode = #tpu.pipeline_mode<synchronous>, transform_indices = @transform_2, window_bounds = array<i64: 1, 128>}, {transform_indices = @transform_3, window_bounds = array<i64: 8, 128>}]} {
    %c0 = arith.constant 0 : index
    %c0_0 = arith.constant 0 : index
    %0 = vector.load %arg1[%c0, %c0_0] : memref<8x48xf32, #tpu.memory_space<vmem>>, vector<8x48xf32>
    %c0_1 = arith.constant 0 : index
    %c0_2 = arith.constant 0 : index
    %1 = vector.load %arg2[%c0_1, %c0_2] : memref<48x128xf32, #tpu.memory_space<vmem>>, vector<48x128xf32>
    %cst = arith.constant dense<0.000000e+00> : vector<8x128xf32>
    %2 = tpu.matmul %0, %1, %cst {dimension_numbers = #tpu.dot_dimension_numbers<[1], [0], [0], [1], [0, 0, 1, 1], [], []>} : vector<8x48xf32>, vector<48x128xf32>, vector<8x128xf32> -> vector<8x128xf32>
    %c0_3 = arith.constant 0 : index
    %c0_4 = arith.constant 0 : index
    %3 = vector.load %arg3[%c0_3, %c0_4] : memref<1x128xf32, #tpu.memory_space<vmem>>, vector<1x128xf32>
    %4 = vector.broadcast %3 : vector<1x128xf32> to vector<8x128xf32>
    %5 = arith.addf %2, %4 : vector<8x128xf32>
    %cst_5 = arith.constant 0.000000e+00 : f32
    %6 = vector.broadcast %cst_5 : f32 to vector<8x128xf32>
    %7 = arith.cmpf ogt, %5, %6 : vector<8x128xf32>
    %cst_6 = arith.constant 0.00999999977 : f32
    %8 = vector.broadcast %cst_6 : f32 to vector<8x128xf32>
    %9 = arith.mulf %5, %8 : vector<8x128xf32>
    %10 = arith.select %7, %5, %9 : vector<8x128xi1>, vector<8x128xf32>
    %c0_7 = arith.constant 0 : index
    %c0_8 = arith.constant 0 : index
    %11 = vector.load %arg4[%c0_7, %c0_8] : memref<8x128xf32, #tpu.memory_space<vmem>>, vector<8x128xf32>
    tpu.vector_store %arg4[%c0_7, %c0_8], %10 {strides = array<i32>} : memref<8x128xf32, #tpu.memory_space<vmem>>, vector<8x128xf32>,
    return
  }
  func.func @transform_0(%arg0: i32) -> (i32, i32) {
    %c0_i32 = arith.constant 0 : i32
    %c0_i32_0 = arith.constant 0 : i32
    return %arg0, %c0_i32 : i32, i32
  }
  func.func @transform_1(%arg0: i32) -> (i32, i32) {
    %c0_i32 = arith.constant 0 : i32
    %c0_i32_0 = arith.constant 0 : i32
    %c0_i32_1 = arith.constant 0 : i32
    return %c0_i32, %c0_i32_0 : i32, i32
  }
  func.func @transform_2(%arg0: i32) -> (i32, i32) {
    %c0_i32 = arith.constant 0 : i32
    %c0_i32_0 = arith.constant 0 : i32
    %c0_i32_1 = arith.constant 0 : i32
    return %c0_i32, %c0_i32_0 : i32, i32
  }
  func.func @transform_3(%arg0: i32) -> (i32, i32) {
    %c0_i32 = arith.constant 0 : i32
    %c0_i32_0 = arith.constant 0 : i32
    return %arg0, %c0_i32 : i32, i32
  }
}

</mosaic_0001>

<llo_original>
// kernel: tpu_custom_call.1
$region0: #{tpu_custom_call.1}
  #allocation0 [shape = 'u32[]', space=smem, size = 0x4, offset = 0x4, fixed_abs, tag = 'smem constant byte address 0x4 - core index']
  #allocation1 [shape = 'u32[144,128]{1,0:T(1,128)}', space=vmem, size = 0x12000, scoped, tag = 'internal scratch']
  %s0 = inlined_call_operand.hbm [shape: f32[8,48], index: 0, kind: input, shape index: {}]
  %s1 = inlined_call_operand.hbm [shape: f32[48,128], index: 1, kind: input, shape index: {}]
  %s2 = inlined_call_operand.vmem [shape: f32[1,128], index: 2, kind: input, shape index: {}]
  %s3 = inlined_call_operand.hbm [shape: f32[8,128], index: 3, kind: output, shape index: {}]
  %s4 = sld [smem:[#allocation0]]
  $region30: #{tpu_custom_call.1} parent=0
    _
  %s6 = ssub.s32 1, %s4
  %s7 = scalar_select 0, %s6, %s4
  $region1: #{tpu_custom_call.1} parent=0
    #allocation2 [shape = 'u8[4096]{0}', space=vmem, size = 0x1000, scoped, tag = 'input window, operand 0, single buffered']
    #allocation3 [shape = 's32[1]{0}', space=sflag, size = 0x4, scoped, tag = 'scoped memory for tpu_custom_call.1']
    #allocation4 [shape = 's32[1]{0}', space=sflag, size = 0x4, scoped, tag = 'scoped memory for tpu_custom_call.1']
    #allocation5 [shape = 'u8[24576]{0}', space=vmem, size = 0x6000, scoped, tag = 'input window, operand 1, single buffered']
    #allocation6 [shape = 's32[1]{0}', space=sflag, size = 0x4, scoped, tag = 'scoped memory for tpu_custom_call.1']
    #allocation7 [shape = 'u8[4096]{0}', space=vmem, size = 0x1000, scoped, tag = 'output window, operand 0, single buffered']
    %8 = vsyncpa [#allocation3], 0
    %9 = vsyncpa [#allocation6], 0
    %10 = vsyncpa [#allocation4], 0
    // Predicated region
    $region2: #{tpu_custom_call.1} parent=1 // pred_check
      _
    $region3: #{tpu_custom_call.1} parent=1 // pred_check_branch
      %12 = sbr.rel (0) target = $region5
    $region4: #{tpu_custom_call.1} parent=1 // pred_region
      %s14 = ssub.s32 128, 128
      %15 = vsyncadd [#allocation3], %s14
      %s17 = sshll.u32 [#allocation2], 4
      %s18 = int_to_ptr.vmem [resolvable:$true] %s17
      %20 = dma.hbm_to_vmem [thread:$0]  %s0, 128, %s18, [#allocation3]
    $region5: #{tpu_custom_call.1} parent=1 // pred_fallthru
      _
    // Predicated region
    $region6: #{tpu_custom_call.1} parent=1 // pred_check
      _
    $region7: #{tpu_custom_call.1} parent=1 // pred_check_branch
      %22 = sbr.rel (0) target = $region9
    $region8: #{tpu_custom_call.1} parent=1 // pred_region
      %s24 = ssub.s32 768, 768
      %25 = vsyncadd [#allocation6], %s24
      %s26 = sshll.u32 [#allocation5], 4
      %s27 = int_to_ptr.vmem [resolvable:$true] %s26
      %32 = dma.hbm_to_vmem [thread:$0]  %s1, 768, %s27, [#allocation6], 128, 128, 8
    $region9: #{tpu_custom_call.1} parent=1 // pred_fallthru
      _
    // Predicated region
    $region10: #{tpu_custom_call.1} parent=1 // pred_check
      _
    $region11: #{tpu_custom_call.1} parent=1 // pred_check_branch
      %34 = sbr.rel (0) target = $region13
    $region12: #{tpu_custom_call.1} parent=1 // pred_region
      _
    $region13: #{tpu_custom_call.1} parent=1 // pred_fallthru
      _
    // Predicated region
    $region14: #{tpu_custom_call.1} parent=1 // pred_check
      _
    $region15: #{tpu_custom_call.1} parent=1 // pred_check_branch
      %36 = sbr.rel (0) target = $region17
    $region16: #{tpu_custom_call.1} parent=1 // pred_region
      %37 = dma.done [#allocation3], 128
    $region17: #{tpu_custom_call.1} parent=1 // pred_fallthru
      _
    // Predicated region
    $region18: #{tpu_custom_call.1} parent=1 // pred_check
      _
    $region19: #{tpu_custom_call.1} parent=1 // pred_check_branch
      %39 = sbr.rel (0) target = $region21
    $region20: #{tpu_custom_call.1} parent=1 // pred_region
      %40 = dma.done [#allocation6], 768
    $region21: #{tpu_custom_call.1} parent=1 // pred_fallthru
      _
    %v41 = vld [vmem:[#allocation2] sm:$0xff]
    %v42 = vld [vmem:[#allocation5] sm:$0xff]
    %v43 = vld [vmem:[#allocation5 + $0x8] sm:$0xff]
    %v44 = vld [vmem:[#allocation5 + $0x10] sm:$0xff]
    %v45 = vld [vmem:[#allocation5 + $0x18] sm:$0xff]
    %v46 = vld [vmem:[#allocation5 + $0x20] sm:$0xff]
    %v47 = vld [vmem:[#allocation5 + $0x28] sm:$0xff]
    %v48 = vld [vmem:[%s2] sm:$0x1]
    %v50 = vlaneseq
    %v51 = vshrl.u32 %v50, 7
    %v52 = vsub.s32 0, %v51
    %v53 = vrot.slane %v48, %v52
    %vm55 = vcmask 392192
    %v57 = vsel %vm55, %v41, 0
    %59 = vmatprep.subr.mxu0 0.0
    %60 = vmatpush1.msra.mxu0 %v42
    %61 = vmatprep.subr.mxu0 0.0
    %62 = vmatpush1.msra.mxu0 %v43
    %63 = vmatprep.subr.mxu0 0.0
    %64 = vmatpush1.msra.mxu0 %v44
    %65 = vmatprep.subr.mxu0 0.0
    %66 = vmatpush1.msra.mxu0 %v45
    %67 = vmatprep.subr.mxu0 0.0
    %68 = vmatpush1.msra.mxu0 %v46
    %69 = vmatprep.subr.mxu0 0.0
    %70 = vmatpush1.msra.mxu0 %v47
    %71 = vmatprep.subr.mxu0 0.0
    %72 = vmatpush1.msra.mxu0 0.0
    %73 = vmatprep.subr.mxu0 0.0
    %74 = vmatpush1.msra.mxu0 0.0
    %75 = vmatprep.subr.mxu0 0.0
    %76 = vmatpush1.msra.mxu0 0.0
    %77 = vmatprep.subr.mxu0 0.0
    %78 = vmatpush1.msra.mxu0 0.0
    %79 = vmatprep.subr.mxu0 0.0
    %80 = vmatpush1.msra.mxu0 0.0
    %81 = vmatprep.subr.mxu0 0.0
    %82 = vmatpush1.msra.mxu0 0.0
    %83 = vmatprep.subr.mxu0 0.0
    %84 = vmatpush1.msra.mxu0 0.0
    %85 = vmatprep.subr.mxu0 0.0
    %86 = vmatpush1.msra.mxu0 0.0
    %87 = vmatprep.subr.mxu0 0.0
    %88 = vmatpush1.msra.mxu0 0.0
    %89 = vmatprep.subr.mxu0 0.0
    %90 = vmatpush1.msra.mxu0 0.0
    %91 = vmatprep.subr.mxu0 0.0
    %92 = vmatpush1.msra.mxu0 0.0
    %93 = vmatprep.subr.mxu0 0.0
    %94 = vmatpush1.msra.mxu0 0.0
    %95 = vmatprep.subr.mxu0 0.0
    %96 = vmatpush1.msra.mxu0 0.0
    %97 = vmatprep.subr.mxu0 0.0
    %98 = vmatpush1.msra.mxu0 0.0
    %99 = vmatprep.subr.mxu0 0.0
    %100 = vmatpush1.msra.mxu0 0.0
    %101 = vmatprep.subr.mxu0 0.0
    %102 = vmatpush1.msra.mxu0 0.0
    %103 = vmatprep.subr.mxu0 0.0
    %104 = vmatpush1.msra.mxu0 0.0
    %105 = vmatprep.subr.mxu0 0.0
    %106 = vmatpush1.msra.mxu0 0.0
    %107 = vmatprep.subr.mxu0 0.0
    %108 = vmatpush1.msra.mxu0 0.0
    %109 = vmatprep.subr.mxu0 0.0
    %110 = vmatpush1.msra.mxu0 0.0
    %111 = vmatprep.subr.mxu0 0.0
    %112 = vmatpush1.msra.mxu0 0.0
    %113 = vmatprep.subr.mxu0 0.0
    %114 = vmatpush1.msra.mxu0 0.0
    %115 = vmatprep.subr.mxu0 0.0
    %116 = vmatpush1.msra.mxu0 0.0
    %117 = vmatprep.subr.mxu0 0.0
    %118 = vmatpush1.msra.mxu0 0.0
    %119 = vmatprep.subr.mxu0 0.0
    %120 = vmatpush1.msra.mxu0 0.0
    %121 = vmatprep.subr.mxu0 0.0
    %122 = vmatpush1.msra.mxu0 0.0
    %123 = vmatprep.mubr.f32.mxu0 0.0
    %124 = vmatmul.mubr.f32.gmra.mrb[0].mxu0 %v57
    %v125 = vpop.f32.mrb[0].mxu0
    %v126 = vadd.f32 %v53, %v125
    %v127 = vpop.f32.mrb[0].mxu0
    %128 = vdwg.mxu0
    %vm129 = vcmp.gt.f32.partialorder %v126, 0.0
    %v130 = vmul.f32 %v126, 0.01
    %v131 = vsel %vm129, %v126, %v130
    %132 = vst [vmem:[#allocation7] sm:$0xff] %v131
    // Predicated region
    $region22: #{tpu_custom_call.1} parent=1 // pred_check
      _
    $region23: #{tpu_custom_call.1} parent=1 // pred_check_branch
      %134 = sbr.rel (0) target = $region25
    $region24: #{tpu_custom_call.1} parent=1 // pred_region
      %s136 = ssub.s32 128, 128
      %137 = vsyncadd [#allocation4], %s136
      %s139 = sshll.u32 [#allocation7], 4
      %s140 = int_to_ptr.vmem [resolvable:$true] %s139
      %142 = dma.vmem_to_hbm [thread:$0]  %s140, 128, %s3, [#allocation4]
    $region25: #{tpu_custom_call.1} parent=1 // pred_fallthru
      _
    // Predicated region
    $region26: #{tpu_custom_call.1} parent=1 // pred_check
      _
    $region27: #{tpu_custom_call.1} parent=1 // pred_check_branch
      %144 = sbr.rel (0) target = $region29
    $region28: #{tpu_custom_call.1} parent=1 // pred_region
      %145 = dma.done [#allocation4], 128
    $region29: #{tpu_custom_call.1} parent=1 // pred_fallthru
      _
    %146 = vsyncpa [#allocation3], 1
    %147 = vsyncpa [#allocation6], 1
    %148 = vsyncpa [#allocation4], 1

</llo_original>
